<compile_context>
chip_gen: v5e
topology: v5e:2x2
jax: 0.10.0
libtpu: 0.0.40
codegen_flags: <defaults>
</compile_context>

<pallas_src>
import jax
import jax.numpy as jnp
from jax.experimental import pallas as pl
from jax.experimental.pallas import tpu as pltpu

_LANES = 512                             # preferred lane-dense slab width
_MIN_LANES = 128                         # hardware lane count
_TARGET_BLOCK_BYTES = 2 * 1024 * 1024    # ~2 MiB per block
_MIN_GRID_STEPS = 4                      # keep pipelining + both v7x cores busy


def _fermi_dirac_kernel(scal_ref, dist_ref, out_ref):
    # scal_ref is a (2,) f32 SMEM ref holding [r, 1/t].
    r = scal_ref[0]
    inv_t = scal_ref[1]
    x = dist_ref[...].astype(jnp.float32)
    # exp on EUP, add/mul on VPU; exact reciprocal (see header note).
    z = jnp.exp((x - r) * inv_t) + 1.0
    out_ref[...] = pl.reciprocal(z, approx=False).astype(out_ref.dtype)


def _round_up(x, m):
    return -(-x // m) * m


def fermi_dirac_decoder(dist, r, t):
    """Pallas TPU implementation of FermiDiracDecoder.forward.

    dist: array of any shape / float dtype.
    r, t: scalars; passed via SMEM so changing them does not recompile.
    """
    dtype = dist.dtype
    orig_shape = dist.shape
    total = dist.size
    if total == 0:
        return dist

    itemsize = jnp.dtype(dtype).itemsize
    sub = {4: 8, 2: 16, 1: 32}.get(itemsize, 8)  # sublane multiple per dtype

    # --- choose a lane-dense 2-D view, zero-copy whenever possible ----------
    last = orig_shape[-1] if dist.ndim >= 2 else 0
    if (last > 0 and last % _MIN_LANES == 0
            and last * sub * itemsize <= _TARGET_BLOCK_BYTES):
        lanes = last                     # keep the original trailing dim
        needs_pad = False
    elif total % _MIN_LANES == 0:
        lanes = next(l for l in (_LANES, 256, _MIN_LANES) if total % l == 0)
        needs_pad = False
    else:
        lanes = _MIN_LANES               # ragged tail: pad < 128 elements
        needs_pad = True

    if needs_pad:
        rows = -(-total // lanes)
        flat = jnp.pad(dist.reshape(-1), (0, rows * lanes - total))
        x2d = flat.reshape(rows, lanes)
    else:
        rows = total // lanes
        x2d = dist.reshape(rows, lanes)  # contiguous -> zero-copy view

    # --- pick tile_rows: ~2 MiB blocks, but keep >= ~4 grid steps -----------
    target_rows = max(sub, (_TARGET_BLOCK_BYTES // (lanes * itemsize)) // sub * sub)
    quarter_rows = max(sub, _round_up(-(-rows // _MIN_GRID_STEPS), sub))
    tile_rows = min(target_rows, quarter_rows)
    if tile_rows > rows:                 # tiny input: single full-extent block
        tile_rows = rows
    grid = (pl.cdiv(rows, tile_rows),)

    scal = jnp.asarray([r, 1.0 / t], dtype=jnp.float32)

    out2d = pl.pallas_call(
        _fermi_dirac_kernel,
        out_shape=jax.ShapeDtypeStruct((rows, lanes), dtype),
        grid=grid,
        in_specs=[
            pl.BlockSpec(memory_space=pltpu.MemorySpace.SMEM),     # [r, 1/t]
            pl.BlockSpec((tile_rows, lanes), lambda i: (i, 0)),    # dist block
        ],
        out_specs=pl.BlockSpec((tile_rows, lanes), lambda i: (i, 0)),
        compiler_params=pltpu.CompilerParams(
            dimension_semantics=("parallel",),
        ),
    )(scal, x2d)

    if needs_pad:
        return out2d.reshape(-1)[:total].reshape(orig_shape)
    return out2d.reshape(orig_shape)


if __name__ == "__main__":
    # Deterministic hyperparameters (as the PyTorch module would be constructed).
    r = 2.0
    t = 1.0

    key = jax.random.PRNGKey(0)
    k1, k2 = jax.random.split(key)

    # Case 1: lane-aligned trailing dim -> zero-copy (no pad / no slice) path.
    dist_a = jax.random.uniform(k1, (16, 256), dtype=jnp.float32,
                                minval=0.0, maxval=5.0)
    # Case 2: ragged element count -> small-tail padding path.
    dist_b = jax.random.uniform(k2, (7, 300), dtype=jnp.float32,
                                minval=0.0, maxval=5.0)

    for dist in (dist_a, dist_b):
        probs = jax.block_until_ready(fermi_dirac_decoder(dist, r, t))
        # Reference check against plain JAX (same math as the PyTorch forward).
        ref = 1.0 / (jnp.exp((dist - r) / t) + 1.0)
        assert probs.shape == dist.shape
        assert jnp.allclose(probs, ref, atol=1e-6, rtol=1e-6), "mismatch vs reference"

    print("KERNEL_OK")
</pallas_src>

<mosaic_0001>
module attributes {stable_mosaic.version = 11 : i64} {
  func.func @_fermi_dirac_kernel(%arg0: i32, %arg1: memref<2xf32, #tpu.memory_space<smem>>, %arg2: memref<8x256xf32, #tpu.memory_space<vmem>>, %arg3: memref<8x256xf32, #tpu.memory_space<vmem>>) attributes {dimension_semantics = [#tpu.dimension_semantics<parallel>], iteration_bounds = array<i64: 2>, scalar_prefetch = 0 : i64, scratch_operands = 0 : i64, tpu.core_type = #tpu.core_type<tc>, window_params = [{transform_indices = @transform_0, window_bounds = array<i64: 2>}, {transform_indices = @transform_1, window_bounds = array<i64: 8, 256>}, {transform_indices = @transform_2, window_bounds = array<i64: 8, 256>}]} {
    %c0 = arith.constant 0 : index
    %0 = memref.load %arg1[%c0] : memref<2xf32, #tpu.memory_space<smem>>
    %c1 = arith.constant 1 : index
    %1 = memref.load %arg1[%c1] : memref<2xf32, #tpu.memory_space<smem>>
    %c0_0 = arith.constant 0 : index
    %c0_1 = arith.constant 0 : index
    %2 = vector.load %arg2[%c0_0, %c0_1] : memref<8x256xf32, #tpu.memory_space<vmem>>, vector<8x256xf32>
    %3 = vector.broadcast %0 : f32 to vector<8x256xf32>
    %4 = arith.subf %2, %3 : vector<8x256xf32>
    %5 = vector.broadcast %1 : f32 to vector<8x256xf32>
    %6 = arith.mulf %4, %5 : vector<8x256xf32>
    %7 = math.exp %6 : vector<8x256xf32>
    %cst = arith.constant 1.000000e+00 : f32
    %8 = vector.broadcast %cst : f32 to vector<8x256xf32>
    %9 = arith.addf %7, %8 : vector<8x256xf32>
    %10 = tpu.reciprocal %9 : vector<8x256xf32> -> vector<8x256xf32>
    %c0_2 = arith.constant 0 : index
    %c0_3 = arith.constant 0 : index
    %11 = vector.load %arg3[%c0_2, %c0_3] : memref<8x256xf32, #tpu.memory_space<vmem>>, vector<8x256xf32>
    tpu.vector_store %arg3[%c0_2, %c0_3], %10 {strides = array<i32>} : memref<8x256xf32, #tpu.memory_space<vmem>>, vector<8x256xf32>,
    return
  }
  func.func @transform_0(%arg0: i32) -> i32 {
    %c0_i32 = arith.constant 0 : i32
    %c0_i32_0 = arith.constant 0 : i32
    return %c0_i32 : i32
  }
  func.func @transform_1(%arg0: i32) -> (i32, i32) {
    %c0_i32 = arith.constant 0 : i32
    %c0_i32_0 = arith.constant 0 : i32
    return %arg0, %c0_i32 : i32, i32
  }
  func.func @transform_2(%arg0: i32) -> (i32, i32) {
    %c0_i32 = arith.constant 0 : i32
    %c0_i32_0 = arith.constant 0 : i32
    return %arg0, %c0_i32 : i32, i32
  }
}

</mosaic_0001>

<llo_original>
// kernel: tpu_custom_call.1
$region0: #{tpu_custom_call.1}
  #allocation0 [shape = 'u32[]', space=smem, size = 0x4, offset = 0x4, fixed_abs, tag = 'smem constant byte address 0x4 - core index']
  #allocation1 [shape = 'u32[72,128]{1,0:T(1,128)}', space=vmem, size = 0x9000, scoped, tag = 'internal scratch']
  %s0 = inlined_call_operand.hbm [shape: f32[2], index: 0, kind: input, shape index: {}]
  %s1 = inlined_call_operand.hbm [shape: f32[16,256], index: 1, kind: input, shape index: {}]
  %s2 = inlined_call_operand.hbm [shape: f32[16,256], index: 2, kind: output, shape index: {}]
  %s3 = sld [smem:[#allocation0]]
  $region49: #{tpu_custom_call.1} parent=0
    _
  %s5 = ssub.s32 1, %s3
  %s6 = scalar_select 0, %s5, %s3
  $region1: #{tpu_custom_call.1} parent=0
    #allocation2 [shape = 'u8[512]{0}', space=smem, size = 0x200, scoped, tag = 'input window, operand 0, single buffered']
    #allocation3 [shape = 's32[2]{0}', space=sflag, size = 0x8, scoped, tag = 'scoped memory for tpu_custom_call.1']
    #allocation4 [shape = 's32[2]{0}', space=sflag, size = 0x8, scoped, tag = 'scoped memory for tpu_custom_call.1']
    #allocation5 [shape = 's32[2]{0}', space=sflag, size = 0x8, scoped, tag = 'scoped memory for tpu_custom_call.1']
    #allocation6 [shape = 'u8[16384]{0}', space=vmem, size = 0x4000, scoped, tag = 'input window, operand 1']
    #allocation7 [shape = 'u8[16384]{0}', space=vmem, size = 0x4000, scoped, tag = 'output window, operand 0']
    %7 = vsyncpa [#allocation5], 0
    %8 = vsyncpa [#allocation3], 0
    %s9 = scalar_lea.sflag [#allocation3], 1
    %10 = vsyncpa %s9, 0
    %11 = vsyncpa [#allocation4], 0
    %s12 = scalar_lea.sflag [#allocation4], 1
    %13 = vsyncpa %s12, 0
    loop: start=0, step=1, limit=4
    $region2: #{tpu_custom_call.1} parent=1 // loop_pre_header
      _
    $region3: #{tpu_custom_call.1} parent=1 // loop_header
      %s15 = sphi 0, %s19
      %p16 = scmp.ge.s32.totalorder %s15, 4
      %s23 = sphi 0, %s23
      %s25 = sphi 0, %s23
      %s26 = sphi 0, %s25
      %s40 = sphi 0, %s26
      %s46 = sphi 0, %s48
      %s49 = sphi 0, %s46
      %s50 = sphi 0, %s49
      %s66 = sphi 0, %s50
      %s72 = sphi 0, %s74
      %s75 = sphi 0, %s72
      %s76 = sphi 0, %s75
      %s92 = sphi 0, %s76
    $region4: #{tpu_custom_call.1} parent=1 // loop_header_branch
      %18 = sbr.rel (%p16) target = $region8
    $region5: #{tpu_custom_call.1} parent=1 // loop_body
      %s20 = ssub.s32 %s15, 1
      %s21 = ssub.s32 %s15, 2
      %s22 = sadd.s32 %s15, 1
      %s24 = sadd.s32 %s23, 1
      %p27 = scmp.eq.s32.totalorder %s15, 1
      %p28 = scmp.ne.s32.totalorder %s23, %s25
      %p29 = scmp.eq.s32.totalorder %s15, 0
      %p30 = por %p28, %p29
      %p31 = scmp.ne.s32.totalorder %s23, %s25
      %p32 = scmp.eq.s32.totalorder %s20, 1
      %p33 = por %p31, %p32
      %p34 = scmp.ne.s32.totalorder %s25, %s26
      %p35 = scmp.eq.s32.totalorder %s20, 0
      %p36 = por %p34, %p35
      %p37 = scmp.ne.s32.totalorder %s25, %s26
      %p38 = scmp.eq.s32.totalorder %s21, 1
      %p39 = por %p37, %p38
      %p41 = scmp.ne.s32.totalorder %s26, %s40
      %p42 = scmp.eq.s32.totalorder %s21, 0
      %p43 = por %p41, %p42
      %s44 = ssub.s32 %s15, %s22
      %p45 = scmp.eq.s32.totalorder %s44, 0
      %s47 = sadd.s32 %s46, 1
      %s48 = scalar_select %p45, %s46, %s47
      %p51 = pneg %p45
      %p52 = scmp.eq.s32.totalorder %s15, 1
      %p53 = por %p51, %p52
      %p54 = scmp.ne.s32.totalorder %s46, %s49
      %p55 = scmp.eq.s32.totalorder %s15, 0
      %p56 = por %p54, %p55
      %p57 = scmp.ne.s32.totalorder %s46, %s49
      %p58 = scmp.eq.s32.totalorder %s20, 1
      %p59 = por %p57, %p58
      %p60 = scmp.ne.s32.totalorder %s49, %s50
      %p61 = scmp.eq.s32.totalorder %s20, 0
      %p62 = por %p60, %p61
      %p63 = scmp.ne.s32.totalorder %s49, %s50
      %p64 = scmp.eq.s32.totalorder %s21, 1
      %p65 = por %p63, %p64
      %p67 = scmp.ne.s32.totalorder %s50, %s66
      %p68 = scmp.eq.s32.totalorder %s21, 0
      %p69 = por %p67, %p68
      %s70 = ssub.s32 %s15, %s22
      %p71 = scmp.eq.s32.totalorder %s70, 0
      %s73 = sadd.s32 %s72, 1
      %s74 = scalar_select %p71, %s72, %s73
      %p77 = pneg %p71
      %p78 = scmp.eq.s32.totalorder %s15, 1
      %p79 = por %p77, %p78
      %p80 = scmp.ne.s32.totalorder %s72, %s75
      %p81 = scmp.eq.s32.totalorder %s15, 0
      %p82 = por %p80, %p81
      %p83 = scmp.ne.s32.totalorder %s72, %s75
      %p84 = scmp.eq.s32.totalorder %s20, 1
      %p85 = por %p83, %p84
      %p86 = scmp.ne.s32.totalorder %s75, %s76
      %p87 = scmp.eq.s32.totalorder %s20, 0
      %p88 = por %p86, %p87
      %p89 = scmp.ne.s32.totalorder %s75, %s76
      %p90 = scmp.eq.s32.totalorder %s21, 1
      %p91 = por %p89, %p90
      %p93 = scmp.ne.s32.totalorder %s76, %s92
      %p94 = scmp.eq.s32.totalorder %s21, 0
      %p95 = por %p93, %p94
      %p96 = scmp.le.s32.totalorder 1, %s15
      %p97 = scmp.lt.s32.totalorder %s15, 3
      %p98 = pnand %p96, %p97
      %p99 = pneg %p98
      // Predicated region
      $region9: #{tpu_custom_call.1} parent=5 // pred_check
        _
      $region10: #{tpu_custom_call.1} parent=5 // pred_check_branch
        %101 = sbr.rel (%p98) target = $region12
      $region11: #{tpu_custom_call.1} parent=5 // pred_region
        %s102 = ssub.s32 %s15, 1
        // Predicated region
        $region13: #{tpu_custom_call.1} parent=11 // pred_check
          %p103 = pneg %p36
        $region14: #{tpu_custom_call.1} parent=11 // pred_check_branch
          %105 = sbr.rel (%p103) target = $region16
        $region15: #{tpu_custom_call.1} parent=11 // pred_region
          %107 = vsyncadd [#allocation5], 0
          %s109 = sshll.u32 %s0, 4
          %s110 = int_to_ptr.hbm [resolvable:$true] %s109
          %112 = dma.hbm_to_smem %s110, 16, [#allocation2], [#allocation5]
        $region16: #{tpu_custom_call.1} parent=11 // pred_fallthru
          _
      $region12: #{tpu_custom_call.1} parent=5 // pred_fallthru
        _
      %p113 = scmp.lt.s32.totalorder %s15, 2
      // Predicated region
      $region17: #{tpu_custom_call.1} parent=5 // pred_check
        %p114 = pneg %p113
      $region18: #{tpu_custom_call.1} parent=5 // pred_check_branch
        %116 = sbr.rel (%p114) target = $region20
      $region19: #{tpu_custom_call.1} parent=5 // pred_region
        // Predicated region
        $region21: #{tpu_custom_call.1} parent=19 // pred_check
          %p117 = pneg %p56
        $region22: #{tpu_custom_call.1} parent=19 // pred_check_branch
          %119 = sbr.rel (%p117) target = $region24
        $region23: #{tpu_custom_call.1} parent=19 // pred_region
          %s120 = sand.u32 %s46, 1
          %s121 = scalar_lea.sflag [#allocation3], %s120
          %s122 = sand.u32 %s46, 1
          %s123 = smul.addr %s122, 16
          %s124 = scalar_lea.vmem [#allocation6], %s123
          %126 = vsyncadd %s121, 0
          %s127 = smul.addr %s15, 2
          %s128 = smul.addr %s127, 8
          %s129 = scalar_lea.hbm %s1, %s128
          %s131 = sshll.u32 %s129, 4
          %s132 = int_to_ptr.hbm [resolvable:$true] %s131
          %s133 = sshll.u32 %s124, 4
          %s134 = int_to_ptr.vmem [resolvable:$true] %s133
          %136 = dma.hbm_to_vmem [thread:$0]  %s132, 256, %s134, %s121
        $region24: #{tpu_custom_call.1} parent=19 // pred_fallthru
          _
      $region20: #{tpu_custom_call.1} parent=5 // pred_fallthru
        _
      %p137 = scmp.le.s32.totalorder 1, %s15
      %p138 = scmp.lt.s32.totalorder %s15, 3
      %p139 = pnand %p137, %p138
      %p140 = pneg %p139
      // Predicated region
      $region25: #{tpu_custom_call.1} parent=5 // pred_check
        _
      $region26: #{tpu_custom_call.1} parent=5 // pred_check_branch
        %142 = sbr.rel (%p139) target = $region28
      $region27: #{tpu_custom_call.1} parent=5 // pred_region
        %s143 = ssub.s32 %s15, 1
        // Predicated region
        $region29: #{tpu_custom_call.1} parent=27 // pred_check
          %p144 = pneg %p36
        $region30: #{tpu_custom_call.1} parent=27 // pred_check_branch
          %146 = sbr.rel (%p144) target = $region32
        $region31: #{tpu_custom_call.1} parent=27 // pred_region
          %148 = dma.done [#allocation5], 16
        $region32: #{tpu_custom_call.1} parent=27 // pred_fallthru
          _
        %s149 = sand.u32 %s49, 1
        %s150 = scalar_lea.sflag [#allocation3], %s149
        %s151 = sand.u32 %s49, 1
        %s152 = smul.addr %s151, 16
        %s153 = scalar_lea.vmem [#allocation6], %s152
        // Predicated region
        $region33: #{tpu_custom_call.1} parent=27 // pred_check
          %p154 = pneg %p62
        $region34: #{tpu_custom_call.1} parent=27 // pred_check_branch
          %156 = sbr.rel (%p154) target = $region36
        $region35: #{tpu_custom_call.1} parent=27 // pred_region
          %158 = dma.done %s150, 256
        $region36: #{tpu_custom_call.1} parent=27 // pred_fallthru
          _
        %159 = sfence
        %p160 = pneg %p36
        %p161 = pneg %p33
        %s162 = sand.u32 %s49, 1
        %s163 = scalar_lea.sflag [#allocation3], %s162
        %s164 = sand.u32 %s49, 1
        %s165 = smul.addr %s164, 16
        %s166 = scalar_lea.vmem [#allocation6], %s165
        %p167 = pneg %p62
        %p168 = pneg %p59
        %p169 = pneg %p88
        %p170 = pneg %p85
        %s171 = sand.u32 %s75, 1
        %s172 = scalar_lea.sflag [#allocation4], %s171
        %s173 = sand.u32 %s75, 1
        %s174 = smul.addr %s173, 16
        %s175 = scalar_lea.vmem [#allocation7], %s174
        %s176 = sld [smem:[#allocation2]]
        %s177 = sld [smem:[#allocation2 + $0x1]]
        %v178 = vld [vmem:[%s153] sm:$0xff]
        %v179 = vld [vmem:[%s153 + $0x8] sm:$0xff]
        %v180 = vstv %s176
        %v181 = vsub.f32 %v178, %v180
        %v182 = vsub.f32 %v179, %v180
        %v183 = vstv %s177
        %v184 = vmul.f32 %v181, %v183
        %v185 = vmul.f32 %v182, %v183
        %v186 = vmul.f32 %v184, 1.442695
        %v187 = vpow.pop %v186
        %v188 = vmul.f32 %v185, 1.442695
        %v189 = vpow.pop %v188
        %v190 = vadd.f32 %v187, 1.0
        %v191 = vadd.f32 %v189, 1.0
        %v192 = vrcp.pop %v190
        %v193 = vmul.f32 %v190, %v192
        %v194 = vsub.f32 1.0, %v193
        %v195 = vmul.f32 %v192, %v194
        %v196 = vadd.f32 %v192, %v195
        %vm197 = vweird.f32 %v190
        %vm198 = vweird.f32 %v192
        %vm199 = vmor %vm197, %vm198
        %v200 = vsel %vm199, %v192, %v196
        %v201 = vand.u32 2147483647, %v190
        %vm202 = vcmp.eq.f32.partialorder %v201, 8.507059e+37
        %v203 = vand.u32 %v190, 2147483648
        %v204 = vor.u32 1.1754944e-38, %v203
        %v205 = vsel %vm202, %v204, %v200
        %v206 = vrcp.pop %v191
        %v207 = vmul.f32 %v191, %v206
        %v208 = vsub.f32 1.0, %v207
        %v209 = vmul.f32 %v206, %v208
        %v210 = vadd.f32 %v206, %v209
        %vm211 = vweird.f32 %v191
        %vm212 = vweird.f32 %v206
        %vm213 = vmor %vm211, %vm212
        %v214 = vsel %vm213, %v206, %v210
        %v215 = vand.u32 2147483647, %v191
        %vm216 = vcmp.eq.f32.partialorder %v215, 8.507059e+37
        %v217 = vand.u32 %v191, 2147483648
        %v218 = vor.u32 1.1754944e-38, %v217
        %v219 = vsel %vm216, %v218, %v214
        %220 = vst [vmem:[%s175] sm:$0xff] %v205
        %221 = vst [vmem:[%s175 + $0x8] sm:$0xff] %v219
        %s222 = sand.u32 %s75, 1
        %s223 = scalar_lea.sflag [#allocation4], %s222
        %s224 = sand.u32 %s75, 1
        %s225 = smul.addr %s224, 16
        %s226 = scalar_lea.vmem [#allocation7], %s225
        // Predicated region
        $region37: #{tpu_custom_call.1} parent=27 // pred_check
          %p227 = pneg %p85
        $region38: #{tpu_custom_call.1} parent=27 // pred_check_branch
          %229 = sbr.rel (%p227) target = $region40
        $region39: #{tpu_custom_call.1} parent=27 // pred_region
          %231 = vsyncadd %s223, 0
          %s232 = smul.addr %s20, 2
          %s233 = smul.addr %s232, 8
          %s234 = scalar_lea.hbm %s2, %s233
          %s236 = sshll.u32 %s226, 4
          %s237 = int_to_ptr.vmem [resolvable:$true] %s236
          %s238 = sshll.u32 %s234, 4
          %s239 = int_to_ptr.hbm [resolvable:$true] %s238
          %241 = dma.vmem_to_hbm [thread:$0]  %s237, 256, %s239, %s223
        $region40: #{tpu_custom_call.1} parent=27 // pred_fallthru
          _
      $region28: #{tpu_custom_call.1} parent=5 // pred_fallthru
        _
      %p242 = scmp.le.s32.totalorder 2, %s15
      // Predicated region
      $region41: #{tpu_custom_call.1} parent=5 // pred_check
        %p243 = pneg %p242
      $region42: #{tpu_custom_call.1} parent=5 // pred_check_branch
        %245 = sbr.rel (%p243) target = $region44
      $region43: #{tpu_custom_call.1} parent=5 // pred_region
        %s246 = ssub.s32 %s15, 2
        // Predicated region
        $region45: #{tpu_custom_call.1} parent=43 // pred_check
          %p247 = pneg %p91
        $region46: #{tpu_custom_call.1} parent=43 // pred_check_branch
          %249 = sbr.rel (%p247) target = $region48
        $region47: #{tpu_custom_call.1} parent=43 // pred_region
          %s250 = sand.u32 %s76, 1
          %s251 = scalar_lea.sflag [#allocation4], %s250
          %s252 = sand.u32 %s76, 1
          %s253 = smul.addr %s252, 16
          %s254 = scalar_lea.vmem [#allocation7], %s253
          %256 = dma.done %s251, 256
        $region48: #{tpu_custom_call.1} parent=43 // pred_fallthru
          _
      $region44: #{tpu_custom_call.1} parent=5 // pred_fallthru
        _
    $region6: #{tpu_custom_call.1} parent=1 // loop_footer
      %s19 = sadd.s32 1, %s15
    $region7: #{tpu_custom_call.1} parent=1 // loop_footer_branch
      %14 = sbr.rel target = $region3
    $region8: #{tpu_custom_call.1} parent=1 // loop_exit
      _
    %257 = vsyncpa [#allocation3], 1
    %s258 = scalar_lea.sflag [#allocation3], 1
    %259 = vsyncpa %s258, 1
    %260 = vsyncpa [#allocation4], 1
    %s261 = scalar_lea.sflag [#allocation4], 1
    %262 = vsyncpa %s261, 1
    %263 = vsyncpa [#allocation5], 1
    %s264 = scalar_lea.sflag [#allocation5], 1
    %265 = vsyncpa %s264, 1

</llo_original>
